<compile_context>
chip_gen: v5e
topology: v5e:2x2
jax: 0.10.0
libtpu: 0.0.40
codegen_flags: <defaults>
</compile_context>

<pallas_src>
import functools

import jax
import jax.numpy as jnp
import numpy as np
from jax.experimental import pallas as pl
from jax.experimental.pallas import tpu as pltpu

MARGIN = 0.1


def _ranking_loss_kernel(
    xn_ref,      # (B, D)   bf16, resident
    neg_ref,     # (B, 1)   f32, resident
    w_ref,       # (D, Tv)  bf16, streamed vocab tile of W^T
    out_ref,     # (1, 8, 128) f32, per-core partial loss (broadcast into slab)
    acc_ref,     # (B, 1)   f32 scratch, per-row running sum
    *,
    margin,
    v_actual,
    vocab_tile,
    needs_mask,
):
    """Grid: (core, vocab_tiles_per_core). Axis 1 is the reduction ('arbitrary')."""
    c = pl.program_id(0)
    k = pl.program_id(1)

    @pl.when(k == 0)
    def _init():
        acc_ref[...] = jnp.zeros_like(acc_ref)

    # (B, D) bf16 @ (D, Tv) bf16 -> (B, Tv) f32 on the MXU (lane-dense, no .T).
    scores = jnp.dot(xn_ref[...], w_ref[...], preferred_element_type=jnp.float32)
    viol = jnp.maximum(margin + scores - neg_ref[...], 0.0)

    if needs_mask:
        # Zero out padded vocab columns (global column index >= V).
        col0 = (c * pl.num_programs(1) + k) * vocab_tile
        cols = col0 + jax.lax.broadcasted_iota(jnp.int32, (1, vocab_tile), 1)
        viol = jnp.where(cols < v_actual, viol, 0.0)

    acc_ref[...] += jnp.sum(viol, axis=1, keepdims=True)

    @pl.when(k == pl.num_programs(1) - 1)
    def _finalize():
        # Partial loss for this core's vocab slice (already divided by B so the
        # wrapper can simply sum the per-core partials).
        partial = jnp.sum(acc_ref[...]) / acc_ref.shape[0]
        out_ref[...] = jnp.full(out_ref.shape, partial, dtype=jnp.float32)


def ranking_loss(inputs, target, emb_weight, *, margin=MARGIN,
                 vocab_tile=2048, num_cores=2):
    """inputs: (B, D) f32, target: (B,) int32, emb_weight: (V, D) f32 -> scalar f32."""
    B, D = inputs.shape
    V, Dw = emb_weight.shape
    assert D == Dw
    assert vocab_tile % 128 == 0

    # --- Small O(B*D) glue, fused cheaply by XLA outside the kernel. ---
    x = inputs.astype(jnp.float32)
    # torch.nn.functional.normalize: x / max(||x||_2, eps), eps=1e-12
    norm = jnp.sqrt(jnp.sum(x * x, axis=1, keepdims=True))
    xn = x / jnp.maximum(norm, 1e-12)
    true_emb = emb_weight[target].astype(jnp.float32)            # gather (B, D)
    neg = jnp.sum(xn * true_emb, axis=1, keepdims=True)          # (B, 1) f32

    # --- Tiling / padding of the (D, V) transposed weight. ---
    tv = min(vocab_tile, pl.cdiv(V, 128) * 128)                  # lane-dense tile
    kt_total = pl.cdiv(V, tv)
    num_cores = max(1, min(num_cores, kt_total))
    kt_per_core = pl.cdiv(kt_total, num_cores)
    v_pad = num_cores * kt_per_core * tv
    needs_mask = v_pad != V

    w_t = jnp.transpose(emb_weight).astype(jnp.bfloat16)         # (D, V) bf16
    if needs_mask:
        w_t = jnp.pad(w_t, ((0, 0), (0, v_pad - V)))
    xn_bf16 = xn.astype(jnp.bfloat16)

    kernel = functools.partial(
        _ranking_loss_kernel,
        margin=margin,
        v_actual=V,
        vocab_tile=tv,
        needs_mask=needs_mask,
    )

    out = pl.pallas_call(
        kernel,
        out_shape=jax.ShapeDtypeStruct((num_cores, 8, 128), jnp.float32),
        grid_spec=pltpu.PrefetchScalarGridSpec(
            num_scalar_prefetch=0,
            grid=(num_cores, kt_per_core),
            in_specs=[
                pl.BlockSpec((B, D), lambda c, k: (0, 0)),                    # xn (resident)
                pl.BlockSpec((B, 1), lambda c, k: (0, 0)),                    # neg (resident)
                pl.BlockSpec((D, tv), lambda c, k: (0, c * kt_per_core + k)), # W^T tile
            ],
            out_specs=pl.BlockSpec((1, 8, 128), lambda c, k: (c, 0, 0)),
            scratch_shapes=[
                pltpu.VMEM((B, 1), jnp.float32),   # per-row accumulator
            ],
        ),
        compiler_params=pltpu.CompilerParams(
            dimension_semantics=("parallel", "arbitrary"),
            vmem_limit_bytes=32 * 1024 * 1024,
        ),
    )(xn_bf16, neg, w_t)

    # Per-core partial losses live at [c, 0, 0]; sum them for the final loss.
    return jnp.sum(out[:, 0, 0])


def _ranking_loss_ref(inputs, target, emb_weight, margin=MARGIN):
    x = inputs.astype(jnp.float32)
    xn = x / jnp.maximum(jnp.linalg.norm(x, axis=1, keepdims=True), 1e-12)
    dot = jnp.dot(xn, emb_weight.T, precision=jax.lax.Precision.HIGHEST)
    neg = jnp.sum(xn * emb_weight[target], axis=1, keepdims=True)
    return jnp.mean(jnp.sum(jnp.maximum(margin + dot - neg, 0.0), axis=1))


if __name__ == "__main__":
    # Small but representative DeViSe-style shapes: batch=8, embed_dim=32,
    # vocab=1000 (deliberately not a multiple of the tile to exercise masking).
    B, D, V = 8, 32, 1000

    key = jax.random.PRNGKey(0)
    k_x, k_w, k_t = jax.random.split(key, 3)

    inputs = jax.random.normal(k_x, (B, D), dtype=jnp.float32)
    emb_weight = jax.random.normal(k_w, (V, D), dtype=jnp.float32)  # nn.Embedding(V, D).weight
    target = jax.random.randint(k_t, (B,), 0, V, dtype=jnp.int32)

    loss = jax.block_until_ready(
        ranking_loss(inputs, target, emb_weight, vocab_tile=256)
    )

    ref = jax.block_until_ready(_ranking_loss_ref(inputs, target, emb_weight))
    # bf16 weight/activation streaming on the MXU vs f32 reference -> loose tol.
    np.testing.assert_allclose(np.asarray(loss), np.asarray(ref), rtol=1e-2, atol=1e-2)

    print("KERNEL_OK")
</pallas_src>

<mosaic_0001>
module attributes {stable_mosaic.version = 11 : i64} {
  func.func @_ranking_loss_kernel(%arg0: i32, %arg1: i32, %arg2: memref<8x32xbf16, #tpu.memory_space<vmem>>, %arg3: memref<8x1xf32, #tpu.memory_space<vmem>>, %arg4: memref<32x256xbf16, #tpu.memory_space<vmem>>, %arg5: memref<1x8x128xf32, #tpu.memory_space<vmem>>, %arg6: memref<8x1xf32, #tpu.memory_space<vmem>>) attributes {dimension_semantics = [#tpu.dimension_semantics<parallel>, #tpu.dimension_semantics<arbitrary>], iteration_bounds = array<i64: 2, 2>, scalar_prefetch = 0 : i64, scratch_operands = 1 : i64, tpu.core_type = #tpu.core_type<tc>, window_params = [{pipeline_mode = #tpu.pipeline_mode<synchronous>, transform_indices = @transform_0, window_bounds = array<i64: 8, 32>}, {pipeline_mode = #tpu.pipeline_mode<synchronous>, transform_indices = @transform_1, window_bounds = array<i64: 8, 1>}, {transform_indices = @transform_2, window_bounds = array<i64: 32, 256>}, {transform_indices = @transform_3, window_bounds = array<i64: 1, 8, 128>}]} {
    %c0_i32 = arith.constant 0 : i32
    %0 = arith.cmpi eq, %arg1, %c0_i32 : i32
    %1 = arith.extui %0 : i1 to i32
    %c0_i32_0 = arith.constant 0 : i32
    %2 = arith.cmpi ne, %1, %c0_i32_0 : i32
    scf.if %2 {
      %cst_15 = arith.constant 0.000000e+00 : f32
      %33 = vector.broadcast %cst_15 : f32 to vector<8x1xf32>
      %c0_16 = arith.constant 0 : index
      %c0_17 = arith.constant 0 : index
      %34 = vector.load %arg6[%c0_16, %c0_17] : memref<8x1xf32, #tpu.memory_space<vmem>>, vector<8x1xf32>
      tpu.vector_store %arg6[%c0_16, %c0_17], %33 {strides = array<i32>} : memref<8x1xf32, #tpu.memory_space<vmem>>, vector<8x1xf32>,
    } else {
    }
    %c0 = arith.constant 0 : index
    %c0_1 = arith.constant 0 : index
    %3 = vector.load %arg2[%c0, %c0_1] : memref<8x32xbf16, #tpu.memory_space<vmem>>, vector<8x32xbf16>
    %c0_2 = arith.constant 0 : index
    %c0_3 = arith.constant 0 : index
    %4 = vector.load %arg4[%c0_2, %c0_3] : memref<32x256xbf16, #tpu.memory_space<vmem>>, vector<32x256xbf16>
    %cst = arith.constant dense<0.000000e+00> : vector<8x256xf32>
    %5 = tpu.matmul %3, %4, %cst {dimension_numbers = #tpu.dot_dimension_numbers<[1], [0], [0], [1], [0, 0, 1, 1], [], []>} : vector<8x32xbf16>, vector<32x256xbf16>, vector<8x256xf32> -> vector<8x256xf32>
    %cst_4 = arith.constant 1.000000e-01 : f32
    %6 = vector.broadcast %cst_4 : f32 to vector<8x256xf32>
    %7 = arith.addf %6, %5 : vector<8x256xf32>
    %c0_5 = arith.constant 0 : index
    %c0_6 = arith.constant 0 : index
    %8 = vector.load %arg3[%c0_5, %c0_6] : memref<8x1xf32, #tpu.memory_space<vmem>>, vector<8x1xf32>
    %9 = vector.broadcast %8 : vector<8x1xf32> to vector<8x256xf32>
    %10 = arith.subf %7, %9 : vector<8x256xf32>
    %cst_7 = arith.constant 0.000000e+00 : f32
    %11 = vector.broadcast %cst_7 : f32 to vector<8x256xf32>
    %12 = arith.maximumf %10, %11 : vector<8x256xf32>
    %c2_i32 = arith.constant 2 : i32
    %13 = arith.muli %arg0, %c2_i32 : i32
    %14 = arith.addi %13, %arg1 : i32
    %c256_i32 = arith.constant 256 : i32
    %15 = arith.muli %14, %c256_i32 : i32
    %16 = tpu.iota {dimensions = array<i32: 1>} : vector<1x256xi32>
    %17 = vector.broadcast %15 : i32 to vector<1x256xi32>
    %18 = arith.addi %17, %16 : vector<1x256xi32>
    %c1000_i32 = arith.constant 1000 : i32
    %19 = vector.broadcast %c1000_i32 : i32 to vector<1x256xi32>
    %20 = arith.cmpi slt, %18, %19 : vector<1x256xi32>
    %cst_8 = arith.constant 0.000000e+00 : f32
    %21 = vector.shape_cast %20 : vector<1x256xi1> to vector<1x256xi1>
    %22 = vector.broadcast %21 : vector<1x256xi1> to vector<8x256xi1>
    %23 = vector.broadcast %cst_8 : f32 to vector<8x256xf32>
    %24 = arith.select %22, %12, %23 : vector<8x256xi1>, vector<8x256xf32>
    %c0_9 = arith.constant 0 : index
    %c0_10 = arith.constant 0 : index
    %25 = vector.load %arg6[%c0_9, %c0_10] : memref<8x1xf32, #tpu.memory_space<vmem>>, vector<8x1xf32>
    %cst_11 = arith.constant dense<0.000000e+00> : vector<8xf32>
    %26 = vector.multi_reduction <add>, %24, %cst_11 [1] : vector<8x256xf32> to vector<8xf32>
    %27 = vector.shape_cast %26 : vector<8xf32> to vector<8x1xf32>
    %28 = arith.addf %25, %27 : vector<8x1xf32>
    %c0_12 = arith.constant 0 : index
    %c0_13 = arith.constant 0 : index
    %29 = vector.load %arg6[%c0_12, %c0_13] : memref<8x1xf32, #tpu.memory_space<vmem>>, vector<8x1xf32>
    tpu.vector_store %arg6[%c0_12, %c0_13], %28 {strides = array<i32>} : memref<8x1xf32, #tpu.memory_space<vmem>>, vector<8x1xf32>,
    %c1_i32 = arith.constant 1 : i32
    %30 = arith.cmpi eq, %arg1, %c1_i32 : i32
    %31 = arith.extui %30 : i1 to i32
    %c0_i32_14 = arith.constant 0 : i32
    %32 = arith.cmpi ne, %31, %c0_i32_14 : i32
    scf.if %32 {
      %c0_15 = arith.constant 0 : index
      %c0_16 = arith.constant 0 : index
      %33 = vector.load %arg6[%c0_15, %c0_16] : memref<8x1xf32, #tpu.memory_space<vmem>>, vector<8x1xf32>
      %34 = vector.shape_cast %33 : vector<8x1xf32> to vector<1x8x1xf32>
      %cst_17 = arith.constant dense<0.000000e+00> : vector<1xf32>
      %35 = vector.multi_reduction <add>, %34, %cst_17 [1, 2] : vector<1x8x1xf32> to vector<1xf32>
      %36 = vector.shape_cast %35 : vector<1xf32> to vector<1x1x1xf32>
      %37 = vector.extract %36[0, 0, 0] : f32 from vector<1x1x1xf32>
      %cst_18 = arith.constant 8.000000e+00 : f32
      %38 = arith.divf %37, %cst_18 : f32
      %39 = vector.broadcast %38 : f32 to vector<1x8x128xf32>
      %c0_19 = arith.constant 0 : index
      %c0_20 = arith.constant 0 : index
      %c0_21 = arith.constant 0 : index
      %40 = vector.load %arg5[%c0_19, %c0_20, %c0_21] : memref<1x8x128xf32, #tpu.memory_space<vmem>>, vector<1x8x128xf32>
      tpu.vector_store %arg5[%c0_19, %c0_20, %c0_21], %39 {strides = array<i32>} : memref<1x8x128xf32, #tpu.memory_space<vmem>>, vector<1x8x128xf32>,
    } else {
    }
    return
  }
  func.func @transform_0(%arg0: i32, %arg1: i32) -> (i32, i32) {
    %c0_i32 = arith.constant 0 : i32
    %c0_i32_0 = arith.constant 0 : i32
    %c0_i32_1 = arith.constant 0 : i32
    return %c0_i32, %c0_i32_0 : i32, i32
  }
  func.func @transform_1(%arg0: i32, %arg1: i32) -> (i32, i32) {
    %c0_i32 = arith.constant 0 : i32
    %c0_i32_0 = arith.constant 0 : i32
    %c0_i32_1 = arith.constant 0 : i32
    return %c0_i32, %c0_i32_0 : i32, i32
  }
  func.func @transform_2(%arg0: i32, %arg1: i32) -> (i32, i32) {
    %c2_i32 = arith.constant 2 : i32
    %0 = arith.muli %arg0, %c2_i32 : i32
    %1 = arith.addi %0, %arg1 : i32
    %c0_i32 = arith.constant 0 : i32
    %c0_i32_0 = arith.constant 0 : i32
    return %c0_i32, %1 : i32, i32
  }
  func.func @transform_3(%arg0: i32, %arg1: i32) -> (i32, i32, i32) {
    %c0_i32 = arith.constant 0 : i32
    %c0_i32_0 = arith.constant 0 : i32
    %c0_i32_1 = arith.constant 0 : i32
    return %arg0, %c0_i32, %c0_i32_0 : i32, i32, i32
  }
}

</mosaic_0001>

<llo_original>
// kernel: tpu_custom_call.1
$region0: #{tpu_custom_call.1}
  #allocation0 [shape = 'u32[]', space=smem, size = 0x4, offset = 0x4, fixed_abs, tag = 'smem constant byte address 0x4 - core index']
  #allocation1 [shape = 'u32[72,128]{1,0:T(1,128)}', space=vmem, size = 0x9000, scoped, tag = 'internal scratch']
  #allocation2 [shape = 'f32[8,1]{1,0:T(8,128)}', space=vmem, size = 0x1000, scoped, tag = 'scratch operand']
  %s0 = inlined_call_operand.vmem [shape: bf16[8,32], index: 0, kind: input, shape index: {}]
  %s1 = inlined_call_operand.vmem [shape: f32[8,1], index: 1, kind: input, shape index: {}]
  %s2 = inlined_call_operand.hbm [shape: bf16[32,1024], index: 2, kind: input, shape index: {}]
  %s3 = inlined_call_operand.hbm [shape: f32[2,8,128], index: 3, kind: output, shape index: {}]
  %s4 = sld [smem:[#allocation0]]
  $region57: #{tpu_custom_call.1} parent=0
    _
  %s6 = ssub.s32 1, %s4
  %s7 = scalar_select 0, %s6, %s4
  $region1: #{tpu_custom_call.1} parent=0
    #allocation3 [shape = 'u8[32768]{0}', space=vmem, size = 0x8000, scoped, tag = 'input window, operand 2']
    #allocation4 [shape = 's32[2]{0}', space=sflag, size = 0x8, scoped, tag = 'scoped memory for tpu_custom_call.1']
    #allocation5 [shape = 's32[2]{0}', space=sflag, size = 0x8, scoped, tag = 'scoped memory for tpu_custom_call.1']
    #allocation6 [shape = 'u8[8192]{0}', space=vmem, size = 0x2000, scoped, tag = 'output window, operand 0']
    %8 = vsyncpa [#allocation4], 0
    %s9 = scalar_lea.sflag [#allocation4], 1
    %10 = vsyncpa %s9, 0
    %11 = vsyncpa [#allocation5], 0
    %s12 = scalar_lea.sflag [#allocation5], 1
    %13 = vsyncpa %s12, 0
    loop: start=0, step=1, limit=6
    $region2: #{tpu_custom_call.1} parent=1 // loop_pre_header
      _
    $region3: #{tpu_custom_call.1} parent=1 // loop_header
      %s15 = sphi 0, %s19
      %p16 = scmp.ge.s32.totalorder %s15, 6
      %s22 = sphi 0, %s34
      %s23 = sphi 0, %s30
      %s24 = sphi 0, %s22
      %s25 = sphi 0, %s23
      %s26 = sphi 0, %s24
      %s27 = sphi 0, %s25
      %s35 = sphi 0, %s35
      %s37 = sphi 0, %s35
      %s38 = sphi 0, %s37
      %s52 = sphi 0, %s38
      %s56 = sphi 0, %s56
      %s58 = sphi 0, %s56
      %s59 = sphi 0, %s58
      %s73 = sphi 0, %s59
      %s83 = sphi 0, %s85
      %s86 = sphi 0, %s83
      %s87 = sphi 0, %s86
      %s103 = sphi 0, %s87
      %s109 = sphi 0, %s111
      %s112 = sphi 0, %s109
      %s113 = sphi 0, %s112
      %s129 = sphi 0, %s113
    $region4: #{tpu_custom_call.1} parent=1 // loop_header_branch
      %18 = sbr.rel (%p16) target = $region8
    $region5: #{tpu_custom_call.1} parent=1 // loop_body
      %s20 = ssub.s32 %s15, 1
      %s21 = ssub.s32 %s15, 2
      %s28 = sadd.s32 1, %s23
      %p29 = scmp.ge.s32.totalorder %s28, 2
      %s30 = scalar_select %p29, 0, %s28
      %s31 = sadd.s32 1, %s22
      %s32 = scalar_select %p29, %s31, %s22
      %p33 = scmp.ge.s32.totalorder %s32, 2
      %s34 = scalar_select %p33, 0, %s32
      %s36 = sadd.s32 %s35, 1
      %p39 = scmp.eq.s32.totalorder %s15, 3
      %p40 = scmp.ne.s32.totalorder %s35, %s37
      %p41 = scmp.eq.s32.totalorder %s15, 0
      %p42 = por %p40, %p41
      %p43 = scmp.ne.s32.totalorder %s35, %s37
      %p44 = scmp.eq.s32.totalorder %s20, 3
      %p45 = por %p43, %p44
      %p46 = scmp.ne.s32.totalorder %s37, %s38
      %p47 = scmp.eq.s32.totalorder %s20, 0
      %p48 = por %p46, %p47
      %p49 = scmp.ne.s32.totalorder %s37, %s38
      %p50 = scmp.eq.s32.totalorder %s21, 3
      %p51 = por %p49, %p50
      %p53 = scmp.ne.s32.totalorder %s38, %s52
      %p54 = scmp.eq.s32.totalorder %s21, 0
      %p55 = por %p53, %p54
      %s57 = sadd.s32 %s56, 1
      %p60 = scmp.eq.s32.totalorder %s15, 3
      %p61 = scmp.ne.s32.totalorder %s56, %s58
      %p62 = scmp.eq.s32.totalorder %s15, 0
      %p63 = por %p61, %p62
      %p64 = scmp.ne.s32.totalorder %s56, %s58
      %p65 = scmp.eq.s32.totalorder %s20, 3
      %p66 = por %p64, %p65
      %p67 = scmp.ne.s32.totalorder %s58, %s59
      %p68 = scmp.eq.s32.totalorder %s20, 0
      %p69 = por %p67, %p68
      %p70 = scmp.ne.s32.totalorder %s58, %s59
      %p71 = scmp.eq.s32.totalorder %s21, 3
      %p72 = por %p70, %p71
      %p74 = scmp.ne.s32.totalorder %s59, %s73
      %p75 = scmp.eq.s32.totalorder %s21, 0
      %p76 = por %p74, %p75
      %s77 = smul.u32 %s22, 2
      %s78 = sadd.s32 %s77, %s23
      %s79 = smul.u32 %s34, 2
      %s80 = sadd.s32 %s79, %s30
      %s81 = ssub.s32 %s78, %s80
      %p82 = scmp.eq.s32.totalorder %s81, 0
      %s84 = sadd.s32 %s83, 1
      %s85 = scalar_select %p82, %s83, %s84
      %p88 = pneg %p82
      %p89 = scmp.eq.s32.totalorder %s15, 3
      %p90 = por %p88, %p89
      %p91 = scmp.ne.s32.totalorder %s83, %s86
      %p92 = scmp.eq.s32.totalorder %s15, 0
      %p93 = por %p91, %p92
      %p94 = scmp.ne.s32.totalorder %s83, %s86
      %p95 = scmp.eq.s32.totalorder %s20, 3
      %p96 = por %p94, %p95
      %p97 = scmp.ne.s32.totalorder %s86, %s87
      %p98 = scmp.eq.s32.totalorder %s20, 0
      %p99 = por %p97, %p98
      %p100 = scmp.ne.s32.totalorder %s86, %s87
      %p101 = scmp.eq.s32.totalorder %s21, 3
      %p102 = por %p100, %p101
      %p104 = scmp.ne.s32.totalorder %s87, %s103
      %p105 = scmp.eq.s32.totalorder %s21, 0
      %p106 = por %p104, %p105
      %s107 = ssub.s32 %s22, %s34
      %p108 = scmp.eq.s32.totalorder %s107, 0
      %s110 = sadd.s32 %s109, 1
      %s111 = scalar_select %p108, %s109, %s110
      %p114 = pneg %p108
      %p115 = scmp.eq.s32.totalorder %s15, 3
      %p116 = por %p114, %p115
      %p117 = scmp.ne.s32.totalorder %s109, %s112
      %p118 = scmp.eq.s32.totalorder %s15, 0
      %p119 = por %p117, %p118
      %p120 = scmp.ne.s32.totalorder %s109, %s112
      %p121 = scmp.eq.s32.totalorder %s20, 3
      %p122 = por %p120, %p121
      %p123 = scmp.ne.s32.totalorder %s112, %s113
      %p124 = scmp.eq.s32.totalorder %s20, 0
      %p125 = por %p123, %p124
      %p126 = scmp.ne.s32.totalorder %s112, %s113
      %p127 = scmp.eq.s32.totalorder %s21, 3
      %p128 = por %p126, %p127
      %p130 = scmp.ne.s32.totalorder %s113, %s129
      %p131 = scmp.eq.s32.totalorder %s21, 0
      %p132 = por %p130, %p131
      %p133 = scmp.le.s32.totalorder 1, %s15
      %p134 = scmp.lt.s32.totalorder %s15, 5
      %p135 = pnand %p133, %p134
      %p136 = pneg %p135
      // Predicated region
      $region9: #{tpu_custom_call.1} parent=5 // pred_check
        _
      $region10: #{tpu_custom_call.1} parent=5 // pred_check_branch
        %138 = sbr.rel (%p135) target = $region12
      $region11: #{tpu_custom_call.1} parent=5 // pred_region
        %s139 = ssub.s32 %s15, 1
        // Predicated region
        $region13: #{tpu_custom_call.1} parent=11 // pred_check
          %p140 = pneg %p48
        $region14: #{tpu_custom_call.1} parent=11 // pred_check_branch
          %142 = sbr.rel (%p140) target = $region16
        $region15: #{tpu_custom_call.1} parent=11 // pred_region
          _
        $region16: #{tpu_custom_call.1} parent=11 // pred_fallthru
          _
        // Predicated region
        $region17: #{tpu_custom_call.1} parent=11 // pred_check
          %p143 = pneg %p69
        $region18: #{tpu_custom_call.1} parent=11 // pred_check_branch
          %145 = sbr.rel (%p143) target = $region20
        $region19: #{tpu_custom_call.1} parent=11 // pred_region
          _
        $region20: #{tpu_custom_call.1} parent=11 // pred_fallthru
          _
      $region12: #{tpu_custom_call.1} parent=5 // pred_fallthru
        _
      %p146 = scmp.lt.s32.totalorder %s15, 4
      // Predicated region
      $region21: #{tpu_custom_call.1} parent=5 // pred_check
        %p147 = pneg %p146
      $region22: #{tpu_custom_call.1} parent=5 // pred_check_branch
        %149 = sbr.rel (%p147) target = $region24
      $region23: #{tpu_custom_call.1} parent=5 // pred_region
        // Predicated region
        $region25: #{tpu_custom_call.1} parent=23 // pred_check
          %p150 = pneg %p93
        $region26: #{tpu_custom_call.1} parent=23 // pred_check_branch
          %152 = sbr.rel (%p150) target = $region28
        $region27: #{tpu_custom_call.1} parent=23 // pred_region
          %s153 = sand.u32 %s83, 1
          %s154 = scalar_lea.sflag [#allocation4], %s153
          %s155 = sand.u32 %s83, 1
          %s156 = smul.addr %s155, 32
          %s157 = scalar_lea.vmem [#allocation3], %s156
          %s158 = smul.u32 %s22, 2
          %s159 = sadd.s32 %s158, %s23
          %s160 = smul.u32 2, %s159
          %162 = vsyncadd %s154, 0
          %s163 = smul.addr %s160, 4
          %s164 = scalar_lea.hbm %s2, %s163
          %s165 = sshll.u32 %s164, 4
          %s166 = int_to_ptr.hbm [resolvable:$true] %s165
          %s167 = sshll.u32 %s157, 4
          %s168 = int_to_ptr.vmem [resolvable:$true] %s167
          %173 = dma.hbm_to_vmem [thread:$0]  %s166, 512, %s168, %s154, 512, 128, 8
        $region28: #{tpu_custom_call.1} parent=23 // pred_fallthru
          _
      $region24: #{tpu_custom_call.1} parent=5 // pred_fallthru
        _
      %p174 = scmp.le.s32.totalorder 1, %s15
      %p175 = scmp.lt.s32.totalorder %s15, 5
      %p176 = pnand %p174, %p175
      %p177 = pneg %p176
      // Predicated region
      $region29: #{tpu_custom_call.1} parent=5 // pred_check
        _
      $region30: #{tpu_custom_call.1} parent=5 // pred_check_branch
        %179 = sbr.rel (%p176) target = $region32
      $region31: #{tpu_custom_call.1} parent=5 // pred_region
        %s180 = ssub.s32 %s15, 1
        %s181 = sand.u32 %s86, 1
        %s182 = scalar_lea.sflag [#allocation4], %s181
        %s183 = sand.u32 %s86, 1
        %s184 = smul.addr %s183, 32
        %s185 = scalar_lea.vmem [#allocation3], %s184
        // Predicated region
        $region33: #{tpu_custom_call.1} parent=31 // pred_check
          %p186 = pneg %p99
        $region34: #{tpu_custom_call.1} parent=31 // pred_check_branch
          %188 = sbr.rel (%p186) target = $region36
        $region35: #{tpu_custom_call.1} parent=31 // pred_region
          %190 = dma.done %s182, 512
        $region36: #{tpu_custom_call.1} parent=31 // pred_fallthru
          _
        %p191 = pneg %p48
        %p192 = pneg %p45
        %p193 = pneg %p69
        %p194 = pneg %p66
        %s195 = sand.u32 %s86, 1
        %s196 = scalar_lea.sflag [#allocation4], %s195
        %s197 = sand.u32 %s86, 1
        %s198 = smul.addr %s197, 32
        %s199 = scalar_lea.vmem [#allocation3], %s198
        %p200 = pneg %p99
        %p201 = pneg %p96
        %p202 = pneg %p125
        %p203 = pneg %p122
        %s204 = sand.u32 %s112, 1
        %s205 = scalar_lea.sflag [#allocation5], %s204
        %s206 = sand.u32 %s112, 1
        %s207 = smul.addr %s206, 8
        %s208 = scalar_lea.vmem [#allocation6], %s207
        %s209 = smul.u32 %s24, 2
        %s210 = sadd.s32 %s209, %s25
        %s211 = smul.u32 2, %s210
        %p213 = scmp.eq.s32.totalorder %s25, 0
        // Predicated region
        $region37: #{tpu_custom_call.1} parent=31 // pred_check
          %p214 = pneg %p213
        $region38: #{tpu_custom_call.1} parent=31 // pred_check_branch
          %216 = sbr.rel (%p214) target = $region40
        $region39: #{tpu_custom_call.1} parent=31 // pred_region
          %vm217 = vcmask 7168
          %218 = vst.msk [vmem:[#allocation2] sm:$0xff] %vm217, 0.0
        $region40: #{tpu_custom_call.1} parent=31 // pred_fallthru
          _
        %v219 = vld [vmem:[%s0] sm:$0xf]
        %v220 = vld [vmem:[%s185] sm:$0xff]
        %v221 = vld [vmem:[%s185 + $0x8] sm:$0xff]
        %v222 = vld [vmem:[%s185 + $0x10] sm:$0xff]
        %v223 = vld [vmem:[%s185 + $0x18] sm:$0xff]
        %v228 = vunpack.c.l.b16 %v220
        %v229 = vunpack.c.h.b16 %v220
        %v230 = vunpack.c.l.b16 %v221
        %v231 = vunpack.c.h.b16 %v221
        %v232 = vunpack.c.l.b16 %v222
        %v233 = vunpack.c.h.b16 %v222
        %v234 = vunpack.c.l.b16 %v223
        %v235 = vunpack.c.h.b16 %v223
        %v236 = vpack.c.b16 %v230, %v228
        %v237 = vpack.c.b16 %v231, %v229
        %v238 = vpack.c.b16 %v234, %v232
        %v239 = vpack.c.b16 %v235, %v233
        %vm244 = vcmask 261120
        %v246 = vsel %vm244, %v219, 0
        %248 = vmatpush.bf16.msra.mxu0 0
        %249 = vmatpush.bf16.msra.mxu0 0
        %250 = vmatpush.bf16.msra.mxu0 0
        %251 = vmatpush.bf16.msra.mxu0 0
        %252 = vmatpush.bf16.msra.mxu0 0
        %253 = vmatpush.bf16.msra.mxu0 0
        %254 = vmatpush.bf16.msra.mxu0 %v238
        %255 = vmatpush.bf16.msra.mxu0 %v236
        %256 = vmatmul.bf16.gmra.mxu0 %v246
        %v257 = vpop.f32.mrf.mxu0
        %v258 = vadd.f32 0.1, %v257
        %v259 = vpop.f32.mrf.mxu0
        %260 = vdwg.mxu0
        %261 = vmatpush.bf16.msra.mxu0 0
        %262 = vmatpush.bf16.msra.mxu0 0
        %263 = vmatpush.bf16.msra.mxu0 0
        %264 = vmatpush.bf16.msra.mxu0 0
        %265 = vmatpush.bf16.msra.mxu0 0
        %266 = vmatpush.bf16.msra.mxu0 0
        %267 = vmatpush.bf16.msra.mxu0 %v239
        %268 = vmatpush.bf16.msra.mxu0 %v237
        %269 = vmatmul.bf16.gmra.mxu0 %v246
        %v270 = vpop.f32.mrf.mxu0
        %v271 = vadd.f32 0.1, %v270
        %v272 = vpop.f32.mrf.mxu0
        %273 = vdwg.mxu0
        %v274 = vld [vmem:[%s1] sm:$0xff]
        %276 = vset.pattern.permute.xlu0 0
        %277 = vperm.xlu0 %276, %v274
        %v278 = vpop.permute.xlu0 %277
        %v280 = vsub.f32 %v258, %v278
        %v281 = vsub.f32 %v271, %v278
        %v282 = vmax.f32 %v280, 0.0
        %v283 = vmax.f32 %v281, 0.0
        %s284 = smul.u32 %s24, 2
        %s285 = sadd.s32 %s284, %s25
        %s286 = smul.u32 %s285, 256
        %v287 = vlaneseq
        %v288 = vand.u32 %v287, 127
        %v289 = vadd.s32 %v288, 128
        %v290 = vstv %s286
        %v291 = vadd.s32 %v290, %v288
        %v292 = vadd.s32 %v290, %v289
        %vm293 = vcmp.lt.s32.totalorder %v291, 1000
        %vm294 = vcmp.lt.s32.totalorder %v292, 1000
        %v295 = vsel %vm293, 1, 0
        %v296 = vsel %vm294, 1, 0
        %vm297 = vcmp.eq.s32.totalorder %v295, 1
        %vm298 = vcmp.eq.s32.totalorder %v296, 1
        %v299 = vsel %vm297, %v282, 0.0
        %v300 = vsel %vm298, %v283, 0.0
        %v301 = vld [vmem:[#allocation2] sm:$0xff]
        %v302 = vadd.f32 %v299, %v300
        %303 = vadd.xlane.f32.xlu0 %v302
        %v304 = vpop.xlane.xlu0 %303
        %v305 = vadd.f32 %v301, %v304
        %vm306 = vcmask 7168
        %307 = vst.msk [vmem:[#allocation2] sm:$0xff] %vm306, %v305
        %p308 = scmp.eq.s32.totalorder %s25, 1
        // Predicated region
        $region41: #{tpu_custom_call.1} parent=31 // pred_check
          %p309 = pneg %p308
        $region42: #{tpu_custom_call.1} parent=31 // pred_check_branch
          %311 = sbr.rel (%p309) target = $region44
        $region43: #{tpu_custom_call.1} parent=31 // pred_region
          %v312 = vld [vmem:[#allocation2] sm:$0xff]
          %v313 = vsel %vm306, %v312, 0.0
          %314 = vadd.xlane.f32.xlu0 %v313
          %v315 = vpop.xlane.xlu0 %314
          %v316 = vrot.slane %v315, 4
          %v317 = vadd.f32 %v315, %v316
          %v318 = vrot.slane %v317, 2
          %v319 = vadd.f32 %v317, %v318
          %v320 = vrot.slane %v319, 1
          %v321 = vadd.f32 %v319, %v320
          %s322 = vtos %v321
          %v323 = vrcp.pop 8.0
          %v324 = vmul.f32 8.0, %v323
          %v325 = vsub.f32 1.0, %v324
          %v326 = vmul.f32 %v323, %v325
          %v327 = vadd.f32 %v323, %v326
          %vm328 = vweird.f32 %v323
          %v329 = vsel %vm328, %v323, %v327
          %s330 = vtos %v329
          %s331 = smul.f32 %s322, %s330
          %v332 = vstv %s331
          %333 = vst [vmem:[%s208] sm:$0xff] %v332
        $region44: #{tpu_custom_call.1} parent=31 // pred_fallthru
          _
        %s334 = sand.u32 %s112, 1
        %s335 = scalar_lea.sflag [#allocation5], %s334
        %s336 = sand.u32 %s112, 1
        %s337 = smul.addr %s336, 8
        %s338 = scalar_lea.vmem [#allocation6], %s337
        // Predicated region
        $region45: #{tpu_custom_call.1} parent=31 // pred_check
          %p339 = pneg %p122
        $region46: #{tpu_custom_call.1} parent=31 // pred_check_branch
          %341 = sbr.rel (%p339) target = $region48
        $region47: #{tpu_custom_call.1} parent=31 // pred_region
          %343 = vsyncadd %s335, 0
          %s344 = smul.addr %s24, 8
          %s345 = scalar_lea.hbm %s3, %s344
          %s347 = sshll.u32 %s338, 4
          %s348 = int_to_ptr.vmem [resolvable:$true] %s347
          %s349 = sshll.u32 %s345, 4
          %s350 = int_to_ptr.hbm [resolvable:$true] %s349
          %352 = dma.vmem_to_hbm [thread:$0]  %s348, 128, %s350, %s335
        $region48: #{tpu_custom_call.1} parent=31 // pred_fallthru
          _
      $region32: #{tpu_custom_call.1} parent=5 // pred_fallthru
        _
      %p353 = scmp.le.s32.totalorder 2, %s15
      // Predicated region
      $region49: #{tpu_custom_call.1} parent=5 // pred_check
        %p354 = pneg %p353
      $region50: #{tpu_custom_call.1} parent=5 // pred_check_branch
        %356 = sbr.rel (%p354) target = $region52
      $region51: #{tpu_custom_call.1} parent=5 // pred_region
        %s357 = ssub.s32 %s15, 2
        // Predicated region
        $region53: #{tpu_custom_call.1} parent=51 // pred_check
          %p358 = pneg %p128
        $region54: #{tpu_custom_call.1} parent=51 // pred_check_branch
          %360 = sbr.rel (%p358) target = $region56
        $region55: #{tpu_custom_call.1} parent=51 // pred_region
          %s361 = sand.u32 %s113, 1
          %s362 = scalar_lea.sflag [#allocation5], %s361
          %s363 = sand.u32 %s113, 1
          %s364 = smul.addr %s363, 8
          %s365 = scalar_lea.vmem [#allocation6], %s364
          %367 = dma.done %s362, 128
        $region56: #{tpu_custom_call.1} parent=51 // pred_fallthru
          _
      $region52: #{tpu_custom_call.1} parent=5 // pred_fallthru
        _
    $region6: #{tpu_custom_call.1} parent=1 // loop_footer
      %s19 = sadd.s32 1, %s15
    $region7: #{tpu_custom_call.1} parent=1 // loop_footer_branch
      %14 = sbr.rel target = $region3
    $region8: #{tpu_custom_call.1} parent=1 // loop_exit
      _
    %368 = vsyncpa [#allocation4], 1
    %s369 = scalar_lea.sflag [#allocation4], 1
    %370 = vsyncpa %s369, 1
    %371 = vsyncpa [#allocation5], 1
    %s372 = scalar_lea.sflag [#allocation5], 1
    %373 = vsyncpa %s372, 1

</llo_original>
